<compile_context>
chip_gen: v5e
topology: v5e:2x2
jax: 0.10.0
libtpu: 0.0.40
codegen_flags: <defaults>
</compile_context>

<pallas_src>
import jax
import jax.numpy as jnp
from jax.experimental import pallas as pl
from jax.experimental.pallas import tpu as pltpu


def _round_up(x, m):
    return ((x + m - 1) // m) * m


def critic_kernel(xt_ref, w_ref, b_ref, wo_ref, bo_ref, q_ref):
    # Fused hidden layer: (n_hidden, feat) @ (feat, TILE_B) -> (n_hidden, TILE_B)
    ht = jnp.dot(w_ref[...], xt_ref[...], preferred_element_type=jnp.float32)
    ht = jnp.maximum(ht + b_ref[...], 0.0)          # bias + ReLU (VPU)
    # Output projection on VPU/XLU: q[i] = sum_j ht[j, i] * wo[j]  -> (1, TILE_B)
    q = jnp.sum(ht * wo_ref[...], axis=0, keepdims=True) + bo_ref[0, 0]
    q_ref[...] = q.astype(q_ref.dtype)


def critic_forward(s, a, params, *, max_tile_b=1024):
    """Fused Critic forward. s: [B, state_dim], a: [B, action_dim] -> [B, 1]."""
    w1t, b1, w2t, b2, wot, bo = params
    B = s.shape[0]
    feat = s.shape[1] + a.shape[1]
    n_hidden = w1t.shape[1]

    # --- fuse the two input linears -----------------------------------------
    x = jnp.concatenate([s, a], axis=1)                     # [B, feat]
    W = jnp.concatenate([w1t, w2t], axis=0).T               # [n_hidden, feat]
    b_col = (b1 + b2).reshape(n_hidden, 1)                  # [n_hidden, 1]
    wo_col = wot.reshape(n_hidden, 1)                       # [n_hidden, 1]
    bo_s = bo.reshape(1, 1).astype(jnp.float32)             # scalar -> SMEM

    # --- transpose the problem: batch on the 128-lane axis ------------------
    tile_b = min(max_tile_b, _round_up(B, 128))
    b_pad = _round_up(B, tile_b)
    xt = jnp.pad(x, ((0, b_pad - B), (0, 0))).T             # [feat, B_pad]
    num_tiles = b_pad // tile_b

    out = pl.pallas_call(
        critic_kernel,
        out_shape=jax.ShapeDtypeStruct((1, b_pad), jnp.float32),
        grid=(num_tiles,),
        in_specs=[
            pl.BlockSpec((feat, tile_b), lambda i: (0, i)),       # x^T batch tile
            pl.BlockSpec((n_hidden, feat), lambda i: (0, 0)),     # fused W (resident)
            pl.BlockSpec((n_hidden, 1), lambda i: (0, 0)),        # fused bias
            pl.BlockSpec((n_hidden, 1), lambda i: (0, 0)),        # output weight col
            pl.BlockSpec(memory_space=pltpu.MemorySpace.SMEM),    # output bias scalar
        ],
        out_specs=pl.BlockSpec((1, tile_b), lambda i: (0, i)),    # lane-dense q row
        compiler_params=pltpu.CompilerParams(
            dimension_semantics=("parallel",)),
    )(xt, W, b_col, wo_col, bo_s)

    return out[0, :B].reshape(B, 1)


def init_params(key, state_dim, action_dim, n_layer=30):
    """Parameter init mirroring the module's __init__.

    layer_1 / layer_2 weights ~ N(0, 0.1), biases = 0.1.
    output layer: PyTorch-default-style uniform(-1/sqrt(fan_in), +).
    Weights are stored transposed (in_features, out_features).
    """
    k1, k2, k3, k4 = jax.random.split(key, 4)
    w1t = jax.random.normal(k1, (state_dim, n_layer), jnp.float32) * 0.1
    b1 = jnp.full((1, n_layer), 0.1, jnp.float32)
    w2t = jax.random.normal(k2, (action_dim, n_layer), jnp.float32) * 0.1
    b2 = jnp.full((1, n_layer), 0.1, jnp.float32)
    bound = 1.0 / jnp.sqrt(jnp.float32(n_layer))
    wot = jax.random.uniform(k3, (n_layer, 1), jnp.float32, -bound, bound)
    bo = jax.random.uniform(k4, (1, 1), jnp.float32, -bound, bound)
    return (w1t, b1, w2t, b2, wot, bo)


def critic_ref(s, a, params):
    """Pure-JAX reference for correctness check."""
    w1t, b1, w2t, b2, wot, bo = params
    h = jnp.maximum((s @ w1t + b1) + (a @ w2t + b2), 0.0)
    return h @ wot + bo


if __name__ == "__main__":
    key = jax.random.PRNGKey(0)
    k_s, k_a, k_p = jax.random.split(key, 3)

    batch, state_dim, action_dim = 2, 8, 4
    s = jax.random.normal(k_s, (batch, state_dim), jnp.float32)
    a = jax.random.normal(k_a, (batch, action_dim), jnp.float32)
    params = init_params(k_p, state_dim, action_dim)

    q = critic_forward(s, a, params)
    jax.block_until_ready(q)

    q_ref = critic_ref(s, a, params)
    assert q.shape == (batch, 1)
    assert jnp.allclose(q, q_ref, atol=1e-5, rtol=1e-5)

    # also exercise a batch larger than one tile (non-multiple of 128)
    k_s2, k_a2 = jax.random.split(k_s)
    B2 = 300
    s2 = jax.random.normal(k_s2, (B2, state_dim), jnp.float32)
    a2 = jax.random.normal(k_a2, (B2, action_dim), jnp.float32)
    q2 = critic_forward(s2, a2, params, max_tile_b=128)
    jax.block_until_ready(q2)
    assert q2.shape == (B2, 1)
    assert jnp.allclose(q2, critic_ref(s2, a2, params), atol=1e-5, rtol=1e-5)

    print("KERNEL_OK")
</pallas_src>

<mosaic_0001>
module attributes {stable_mosaic.version = 11 : i64} {
  func.func @critic_kernel(%arg0: i32, %arg1: memref<12x128xf32, #tpu.memory_space<vmem>>, %arg2: memref<30x12xf32, #tpu.memory_space<vmem>>, %arg3: memref<30x1xf32, #tpu.memory_space<vmem>>, %arg4: memref<30x1xf32, #tpu.memory_space<vmem>>, %arg5: memref<1x1xf32, #tpu.memory_space<smem>>, %arg6: memref<1x128xf32, #tpu.memory_space<vmem>>) attributes {dimension_semantics = [#tpu.dimension_semantics<parallel>], iteration_bounds = array<i64: 1>, scalar_prefetch = 0 : i64, scratch_operands = 0 : i64, tpu.core_type = #tpu.core_type<tc>, window_params = [{transform_indices = @transform_0, window_bounds = array<i64: 12, 128>}, {pipeline_mode = #tpu.pipeline_mode<synchronous>, transform_indices = @transform_1, window_bounds = array<i64: 30, 12>}, {pipeline_mode = #tpu.pipeline_mode<synchronous>, transform_indices = @transform_2, window_bounds = array<i64: 30, 1>}, {pipeline_mode = #tpu.pipeline_mode<synchronous>, transform_indices = @transform_3, window_bounds = array<i64: 30, 1>}, {transform_indices = @transform_4, window_bounds = array<i64: 1, 1>}, {transform_indices = @transform_5, window_bounds = array<i64: 1, 128>}]} {
    %c0 = arith.constant 0 : index
    %c0_0 = arith.constant 0 : index
    %0 = vector.load %arg2[%c0, %c0_0] : memref<30x12xf32, #tpu.memory_space<vmem>>, vector<30x12xf32>
    %c0_1 = arith.constant 0 : index
    %c0_2 = arith.constant 0 : index
    %1 = vector.load %arg1[%c0_1, %c0_2] : memref<12x128xf32, #tpu.memory_space<vmem>>, vector<12x128xf32>
    %cst = arith.constant dense<0.000000e+00> : vector<30x128xf32>
    %2 = tpu.matmul %0, %1, %cst {dimension_numbers = #tpu.dot_dimension_numbers<[1], [0], [0], [1], [0, 0, 1, 1], [], []>} : vector<30x12xf32>, vector<12x128xf32>, vector<30x128xf32> -> vector<30x128xf32>
    %c0_3 = arith.constant 0 : index
    %c0_4 = arith.constant 0 : index
    %3 = vector.load %arg3[%c0_3, %c0_4] : memref<30x1xf32, #tpu.memory_space<vmem>>, vector<30x1xf32>
    %4 = vector.broadcast %3 : vector<30x1xf32> to vector<30x128xf32>
    %5 = arith.addf %2, %4 : vector<30x128xf32>
    %cst_5 = arith.constant 0.000000e+00 : f32
    %6 = vector.broadcast %cst_5 : f32 to vector<30x128xf32>
    %7 = arith.maximumf %5, %6 : vector<30x128xf32>
    %c0_6 = arith.constant 0 : index
    %c0_7 = arith.constant 0 : index
    %8 = vector.load %arg4[%c0_6, %c0_7] : memref<30x1xf32, #tpu.memory_space<vmem>>, vector<30x1xf32>
    %9 = vector.broadcast %8 : vector<30x1xf32> to vector<30x128xf32>
    %10 = arith.mulf %7, %9 : vector<30x128xf32>
    %cst_8 = arith.constant dense<0.000000e+00> : vector<128xf32>
    %11 = vector.multi_reduction <add>, %10, %cst_8 [0] : vector<30x128xf32> to vector<128xf32>
    %12 = vector.shape_cast %11 : vector<128xf32> to vector<1x128xf32>
    %c0_9 = arith.constant 0 : index
    %c0_10 = arith.constant 0 : index
    %13 = memref.load %arg5[%c0_9, %c0_10] : memref<1x1xf32, #tpu.memory_space<smem>>
    %14 = vector.broadcast %13 : f32 to vector<1x128xf32>
    %15 = arith.addf %12, %14 : vector<1x128xf32>
    %c0_11 = arith.constant 0 : index
    %c0_12 = arith.constant 0 : index
    %16 = vector.load %arg6[%c0_11, %c0_12] : memref<1x128xf32, #tpu.memory_space<vmem>>, vector<1x128xf32>
    tpu.vector_store %arg6[%c0_11, %c0_12], %15 {strides = array<i32>} : memref<1x128xf32, #tpu.memory_space<vmem>>, vector<1x128xf32>,
    return
  }
  func.func @transform_0(%arg0: i32) -> (i32, i32) {
    %c0_i32 = arith.constant 0 : i32
    %c0_i32_0 = arith.constant 0 : i32
    return %c0_i32, %arg0 : i32, i32
  }
  func.func @transform_1(%arg0: i32) -> (i32, i32) {
    %c0_i32 = arith.constant 0 : i32
    %c0_i32_0 = arith.constant 0 : i32
    %c0_i32_1 = arith.constant 0 : i32
    return %c0_i32, %c0_i32_0 : i32, i32
  }
  func.func @transform_2(%arg0: i32) -> (i32, i32) {
    %c0_i32 = arith.constant 0 : i32
    %c0_i32_0 = arith.constant 0 : i32
    %c0_i32_1 = arith.constant 0 : i32
    return %c0_i32, %c0_i32_0 : i32, i32
  }
  func.func @transform_3(%arg0: i32) -> (i32, i32) {
    %c0_i32 = arith.constant 0 : i32
    %c0_i32_0 = arith.constant 0 : i32
    %c0_i32_1 = arith.constant 0 : i32
    return %c0_i32, %c0_i32_0 : i32, i32
  }
  func.func @transform_4(%arg0: i32) -> (i32, i32) {
    %c0_i32 = arith.constant 0 : i32
    %c0_i32_0 = arith.constant 0 : i32
    %c0_i32_1 = arith.constant 0 : i32
    return %c0_i32, %c0_i32_0 : i32, i32
  }
  func.func @transform_5(%arg0: i32) -> (i32, i32) {
    %c0_i32 = arith.constant 0 : i32
    %c0_i32_0 = arith.constant 0 : i32
    return %c0_i32, %arg0 : i32, i32
  }
}

</mosaic_0001>

<llo_original>
// kernel: tpu_custom_call.1
$region0: #{tpu_custom_call.1}
  #allocation0 [shape = 'u32[]', space=smem, size = 0x4, offset = 0x4, fixed_abs, tag = 'smem constant byte address 0x4 - core index']
  #allocation1 [shape = 'u32[72,128]{1,0:T(1,128)}', space=vmem, size = 0x9000, scoped, tag = 'internal scratch']
  #allocation2 [shape = 'f32[1,1]{1,0:T(1,128)S(6)}', space=smem, size = 0x200, scoped, tag = 'scoped memory for tpu_custom_call.1']
  %s0 = inlined_call_operand.vmem [shape: f32[12,128], index: 0, kind: input, shape index: {}]
  %s1 = inlined_call_operand.vmem [shape: f32[30,12], index: 1, kind: input, shape index: {}]
  %s2 = inlined_call_operand.vmem [shape: f32[30,1], index: 2, kind: input, shape index: {}]
  %s3 = inlined_call_operand.vmem [shape: f32[30,1], index: 3, kind: input, shape index: {}]
  %s4 = inlined_call_operand.<no memory space> [shape: f32[1,1], index: 4, kind: input, shape index: {}]
  %s5 = inlined_call_operand.hbm [shape: f32[1,128], index: 5, kind: output, shape index: {}]
  %s6 = sld [smem:[#allocation0]]
  $region30: #{tpu_custom_call.1} parent=0
    _
  %s8 = ssub.s32 1, %s6
  %s9 = scalar_select 0, %s8, %s6
  %10 = sst [smem:[#allocation2]] %s4
  $region1: #{tpu_custom_call.1} parent=0
    #allocation3 [shape = 'u8[512]{0}', space=vmem, size = 0x400, scoped, tag = 'output window, operand 0, single buffered']
    #allocation4 [shape = 's32[1]{0}', space=sflag, size = 0x4, scoped, tag = 'scoped memory for tpu_custom_call.1']
    %11 = vsyncpa [#allocation4], 0
    // Predicated region
    $region2: #{tpu_custom_call.1} parent=1 // pred_check
      _
    $region3: #{tpu_custom_call.1} parent=1 // pred_check_branch
      %13 = sbr.rel (0) target = $region5
    $region4: #{tpu_custom_call.1} parent=1 // pred_region
      _
    $region5: #{tpu_custom_call.1} parent=1 // pred_fallthru
      _
    // Predicated region
    $region6: #{tpu_custom_call.1} parent=1 // pred_check
      _
    $region7: #{tpu_custom_call.1} parent=1 // pred_check_branch
      %15 = sbr.rel (0) target = $region9
    $region8: #{tpu_custom_call.1} parent=1 // pred_region
      _
    $region9: #{tpu_custom_call.1} parent=1 // pred_fallthru
      _
    // Predicated region
    $region10: #{tpu_custom_call.1} parent=1 // pred_check
      _
    $region11: #{tpu_custom_call.1} parent=1 // pred_check_branch
      %17 = sbr.rel (0) target = $region13
    $region12: #{tpu_custom_call.1} parent=1 // pred_region
      _
    $region13: #{tpu_custom_call.1} parent=1 // pred_fallthru
      _
    // Predicated region
    $region14: #{tpu_custom_call.1} parent=1 // pred_check
      _
    $region15: #{tpu_custom_call.1} parent=1 // pred_check_branch
      %19 = sbr.rel (0) target = $region17
    $region16: #{tpu_custom_call.1} parent=1 // pred_region
      _
    $region17: #{tpu_custom_call.1} parent=1 // pred_fallthru
      _
    // Predicated region
    $region18: #{tpu_custom_call.1} parent=1 // pred_check
      _
    $region19: #{tpu_custom_call.1} parent=1 // pred_check_branch
      %21 = sbr.rel (0) target = $region21
    $region20: #{tpu_custom_call.1} parent=1 // pred_region
      _
    $region21: #{tpu_custom_call.1} parent=1 // pred_fallthru
      _
    %v22 = vld [vmem:[%s1] sm:$0xff]
    %v23 = vld [vmem:[%s1 + $0x8] sm:$0xff]
    %v24 = vld [vmem:[%s1 + $0x10] sm:$0xff]
    %v25 = vld [vmem:[%s1 + $0x18] sm:$0x3f]
    %v26 = vld [vmem:[%s0] sm:$0xff]
    %v27 = vld [vmem:[%s0 + $0x8] sm:$0xf]
    %v28 = vld [vmem:[%s2] sm:$0xff]
    %v29 = vld [vmem:[%s2 + $0x8] sm:$0xff]
    %v30 = vld [vmem:[%s2 + $0x10] sm:$0xff]
    %v31 = vld [vmem:[%s2 + $0x18] sm:$0x3f]
    %33 = vset.pattern.permute.xlu0 0
    %34 = vperm.xlu0 %33, %v28
    %v35 = vpop.permute.xlu0 %34
    %38 = vset.pattern.permute.xlu0 0
    %39 = vperm.xlu0 %38, %v29
    %v40 = vpop.permute.xlu0 %39
    %43 = vset.pattern.permute.xlu0 0
    %44 = vperm.xlu0 %43, %v30
    %v45 = vpop.permute.xlu0 %44
    %48 = vset.pattern.permute.xlu0 0
    %49 = vperm.xlu0 %48, %v31
    %v50 = vpop.permute.xlu0 %49
    %vm52 = vcmask 97280
    %v54 = vsel %vm52, %v22, 0
    %v57 = vsel %vm52, %v23, 0
    %v60 = vsel %vm52, %v24, 0
    %v63 = vsel %vm52, %v25, 0
    %vm65 = vcmask 1043456
    %v67 = vsel %vm65, %v27, 0
    %69 = vmatpush.msra.mxu0 0.0
    %70 = vmatpush.msra.mxu0 0.0
    %71 = vmatpush.msra.mxu0 0.0
    %72 = vmatpush.msra.mxu0 0.0
    %73 = vmatpush.msra.mxu0 0.0
    %74 = vmatpush.msra.mxu0 0.0
    %75 = vmatpush.msra.mxu0 0.0
    %76 = vmatpush.msra.mxu0 0.0
    %77 = vmatpush.msra.mxu0 0.0
    %78 = vmatpush.msra.mxu0 0.0
    %79 = vmatpush.msra.mxu0 0.0
    %80 = vmatpush.msra.mxu0 0.0
    %81 = vmatpush.msra.mxu0 0.0
    %82 = vmatpush.msra.mxu0 0.0
    %83 = vmatpush.msra.mxu0 %v67
    %84 = vmatpush.msra.mxu0 %v26
    %85 = vmatmul.f32.gmra.mxu0 %v54
    %v86 = vpop.f32.mrf.mxu0
    %v87 = vadd.f32 %v35, %v86
    %88 = vmatmul.f32.gmra.mxu0 %v57
    %v89 = vpop.f32.mrf.mxu0
    %v90 = vadd.f32 %v40, %v89
    %91 = vmatmul.f32.gmra.mxu0 %v60
    %v92 = vpop.f32.mrf.mxu0
    %v93 = vadd.f32 %v45, %v92
    %94 = vmatmul.f32.gmra.mxu0 %v63
    %v95 = vpop.f32.mrf.mxu0
    %v96 = vadd.f32 %v50, %v95
    %97 = vdwg.mxu0
    %v98 = vmax.f32 %v87, 0.0
    %v99 = vmax.f32 %v90, 0.0
    %v100 = vmax.f32 %v93, 0.0
    %v101 = vmax.f32 %v96, 0.0
    %v102 = vld [vmem:[%s3] sm:$0xff]
    %v103 = vld [vmem:[%s3 + $0x8] sm:$0xff]
    %v104 = vld [vmem:[%s3 + $0x10] sm:$0xff]
    %v105 = vld [vmem:[%s3 + $0x18] sm:$0x3f]
    %107 = vset.pattern.permute.xlu0 0
    %108 = vperm.xlu0 %107, %v102
    %v109 = vpop.permute.xlu0 %108
    %112 = vset.pattern.permute.xlu0 0
    %113 = vperm.xlu0 %112, %v103
    %v114 = vpop.permute.xlu0 %113
    %117 = vset.pattern.permute.xlu0 0
    %118 = vperm.xlu0 %117, %v104
    %v119 = vpop.permute.xlu0 %118
    %122 = vset.pattern.permute.xlu0 0
    %123 = vperm.xlu0 %122, %v105
    %v124 = vpop.permute.xlu0 %123
    %v126 = vmul.f32 %v98, %v109
    %v127 = vmul.f32 %v99, %v114
    %v128 = vmul.f32 %v100, %v119
    %v129 = vmul.f32 %v101, %v124
    %v130 = vadd.f32 %v126, %v127
    %v131 = vadd.f32 %v130, %v128
    %vm132 = vcmask 1045504
    %v133 = vsel %vm132, %v129, 0.0
    %v134 = vadd.f32 %v131, %v133
    %v135 = vrot.slane %v134, 4
    %v136 = vadd.f32 %v134, %v135
    %v137 = vrot.slane %v136, 2
    %v138 = vadd.f32 %v136, %v137
    %v139 = vrot.slane %v138, 1
    %v140 = vadd.f32 %v138, %v139
    %s141 = sld [smem:[#allocation2]]
    %v142 = vstv %s141
    %v143 = vadd.f32 %v140, %v142
    %144 = vst [vmem:[#allocation3] sm:$0x1] %v143
    // Predicated region
    $region22: #{tpu_custom_call.1} parent=1 // pred_check
      _
    $region23: #{tpu_custom_call.1} parent=1 // pred_check_branch
      %146 = sbr.rel (0) target = $region25
    $region24: #{tpu_custom_call.1} parent=1 // pred_region
      %148 = vsyncadd [#allocation4], 0
      %s150 = sshll.u32 [#allocation3], 4
      %s151 = int_to_ptr.vmem [resolvable:$true] %s150
      %s152 = sshll.u32 %s5, 4
      %s153 = int_to_ptr.hbm [resolvable:$true] %s152
      %155 = dma.vmem_to_hbm [thread:$0]  %s151, 16, %s153, [#allocation4]
    $region25: #{tpu_custom_call.1} parent=1 // pred_fallthru
      _
    // Predicated region
    $region26: #{tpu_custom_call.1} parent=1 // pred_check
      _
    $region27: #{tpu_custom_call.1} parent=1 // pred_check_branch
      %157 = sbr.rel (0) target = $region29
    $region28: #{tpu_custom_call.1} parent=1 // pred_region
      %159 = dma.done [#allocation4], 16
    $region29: #{tpu_custom_call.1} parent=1 // pred_fallthru
      _
    %160 = vsyncpa [#allocation4], 1

</llo_original>
